<compile_context>
chip_gen: v6e
topology: v6e:2x2x1
jax: 0.10.0
libtpu: 0.0.40
codegen_flags: <defaults>
</compile_context>

<pallas_src>
import jax
import jax.numpy as jnp
from jax.experimental import pallas as pl
from jax.experimental.pallas import tpu as pltpu

IN_F = 50
HID_F = 20
OUT_F = 2

_LANE = 128
_SUB = 8


def alicenet_kernel(x_ref, w1t_ref, b1_ref, w2t_ref, b2_ref, o_ref):
    # x_ref: (tb, IN_F) natural layout; w1t_ref: (HID_F, IN_F).
    # h^T = w1^T @ x^T, expressed as a contraction of both minor dims
    # (same MXU pattern as q @ k^T in flash attention) -> (HID_F, tb).
    h = jax.lax.dot_general(
        w1t_ref[...], x_ref[...],
        dimension_numbers=(((1,), (1,)), ((), ())),
        preferred_element_type=jnp.float32,
    )
    # Bias + ReLU in f32 on the VPU (lane-broadcast of the (HID_F, 1) bias).
    h = jnp.maximum(h + b1_ref[...], 0.0)
    # fc2: (OUT_F, HID_F) @ (HID_F, tb) -> (OUT_F, tb). Tiny, hidden under the
    # HBM stream; output stays lane-dense.
    y = jnp.dot(w2t_ref[...], h, preferred_element_type=jnp.float32) + b2_ref[...]
    o_ref[...] = y.astype(o_ref.dtype)


def _round_up(n, m):
    return ((n + m - 1) // m) * m


def alicenet_forward(x, w1, b1, w2, b2, *, tb=16384):
    """x: (B, IN_F) f32; w1: (IN_F, HID_F); b1: (HID_F,); w2: (HID_F, OUT_F); b2: (OUT_F,)."""
    B = x.shape[0]

    if B < 128:
        # Tiny batches: pad to one 128-lane output tile (<=127 extra rows, negligible).
        x_in = jnp.pad(x, ((0, 128 - B), (0, 0)))
        tb_eff = 128
    else:
        x_in = x
        # Keep the grid deep enough (~8 steps) so both v7x TensorCores and the
        # double-buffered pipeline stay fed, never exceed the batch, and keep a
        # 2048-row floor so the per-step DMA amortizes the ~0.35us step cost.
        feed = _round_up(pl.cdiv(B, 8), 128)
        tb_eff = max(128, min(_round_up(tb, 128), (B // 128) * 128, max(2048, feed)))
    Bp = x_in.shape[0]
    grid = (pl.cdiv(Bp, tb_eff),)

    # Small, one-time wrapper transposes of the tiny weight tensors only.
    w1t = w1.T.astype(jnp.float32)                      # (HID_F, IN_F)
    b1c = b1.reshape(HID_F, 1).astype(jnp.float32)      # (HID_F, 1)
    w2t = w2.T.astype(jnp.float32)                      # (OUT_F, HID_F)
    b2c = b2.reshape(OUT_F, 1).astype(jnp.float32)      # (OUT_F, 1)

    # VMEM budget with lane/sublane padding; pipelined tiles are double-buffered.
    x_buf = tb_eff * _round_up(IN_F, _LANE) * 4                      # (tb, 50) f32 -> 128 lanes
    o_buf = _round_up(OUT_F, _SUB) * tb_eff * 4                      # (2, tb) f32 -> 8 sublanes
    w_buf = (_round_up(HID_F, _SUB) * _round_up(IN_F, _LANE)
             + _round_up(HID_F, _SUB) * _LANE
             + _round_up(OUT_F, _SUB) * _round_up(HID_F, _LANE)
             + _round_up(OUT_F, _SUB) * _LANE) * 4
    h_scr = _round_up(HID_F, _SUB) * tb_eff * 4                      # intermediate h^T
    vmem_limit = int(min(48 << 20,
                         max(16 << 20,
                             2 * (x_buf + o_buf) + 2 * w_buf + h_scr + (4 << 20))))

    out_t = pl.pallas_call(
        alicenet_kernel,
        out_shape=jax.ShapeDtypeStruct((OUT_F, Bp), jnp.float32),
        grid=grid,
        in_specs=[
            pl.BlockSpec((tb_eff, IN_F), lambda i: (i, 0)),     # x: streamed, natural layout
            pl.BlockSpec((HID_F, IN_F), lambda i: (0, 0)),      # weights/biases: fetched once,
            pl.BlockSpec((HID_F, 1), lambda i: (0, 0)),         # VMEM-resident across the grid
            pl.BlockSpec((OUT_F, HID_F), lambda i: (0, 0)),
            pl.BlockSpec((OUT_F, 1), lambda i: (0, 0)),
        ],
        out_specs=pl.BlockSpec((OUT_F, tb_eff), lambda i: (0, i)),
        compiler_params=pltpu.CompilerParams(
            dimension_semantics=("parallel",),   # shard batch tiles across TCs (v7x megacore)
            vmem_limit_bytes=vmem_limit,
        ),
    )(x_in, w1t, b1c, w2t, b2c)

    # Tiny (B*2 floats) transpose back to the PyTorch (B, OUT_F) convention.
    return out_t[:, :B].T


def init_params(key):
    # Deterministic init mimicking PyTorch nn.Linear default:
    # U(-1/sqrt(fan_in), 1/sqrt(fan_in)) for both weight and bias.
    k1, k2, k3, k4 = jax.random.split(key, 4)
    bound1 = 1.0 / jnp.sqrt(IN_F)
    bound2 = 1.0 / jnp.sqrt(HID_F)
    w1 = jax.random.uniform(k1, (IN_F, HID_F), jnp.float32, -bound1, bound1)
    b1 = jax.random.uniform(k2, (HID_F,), jnp.float32, -bound1, bound1)
    w2 = jax.random.uniform(k3, (HID_F, OUT_F), jnp.float32, -bound2, bound2)
    b2 = jax.random.uniform(k4, (OUT_F,), jnp.float32, -bound2, bound2)
    return w1, b1, w2, b2


if __name__ == "__main__":
    key = jax.random.PRNGKey(0)
    pkey, xkey = jax.random.split(key)
    w1, b1, w2, b2 = init_params(pkey)

    B = 8
    x = jax.random.normal(xkey, (B, IN_F), dtype=jnp.float32)

    out = jax.block_until_ready(alicenet_forward(x, w1, b1, w2, b2))

    # Pure-JAX f32 reference (HIGHEST precision matmuls).
    hi = jax.lax.Precision.HIGHEST
    ref_h = jnp.maximum(jax.lax.dot(x, w1, precision=hi) + b1, 0.0)
    ref = jax.lax.dot(ref_h, w2, precision=hi) + b2

    assert out.shape == (B, OUT_F)
    assert jnp.allclose(out, ref, atol=2e-3, rtol=2e-3), float(jnp.max(jnp.abs(out - ref)))

    print("KERNEL_OK")
</pallas_src>

<mosaic_0001>
module attributes {stable_mosaic.version = 11 : i64} {
  func.func @alicenet_kernel(%arg0: i32, %arg1: memref<128x50xf32, #tpu.memory_space<vmem>>, %arg2: memref<20x50xf32, #tpu.memory_space<vmem>>, %arg3: memref<20x1xf32, #tpu.memory_space<vmem>>, %arg4: memref<2x20xf32, #tpu.memory_space<vmem>>, %arg5: memref<2x1xf32, #tpu.memory_space<vmem>>, %arg6: memref<2x128xf32, #tpu.memory_space<vmem>>) attributes {dimension_semantics = [#tpu.dimension_semantics<parallel>], iteration_bounds = array<i64: 1>, scalar_prefetch = 0 : i64, scratch_operands = 0 : i64, tpu.core_type = #tpu.core_type<tc>, window_params = [{transform_indices = @transform_0, window_bounds = array<i64: 128, 50>}, {pipeline_mode = #tpu.pipeline_mode<synchronous>, transform_indices = @transform_1, window_bounds = array<i64: 20, 50>}, {pipeline_mode = #tpu.pipeline_mode<synchronous>, transform_indices = @transform_2, window_bounds = array<i64: 20, 1>}, {pipeline_mode = #tpu.pipeline_mode<synchronous>, transform_indices = @transform_3, window_bounds = array<i64: 2, 20>}, {pipeline_mode = #tpu.pipeline_mode<synchronous>, transform_indices = @transform_4, window_bounds = array<i64: 2, 1>}, {transform_indices = @transform_5, window_bounds = array<i64: 2, 128>}]} {
    %c0 = arith.constant 0 : index
    %c0_0 = arith.constant 0 : index
    %0 = vector.load %arg2[%c0, %c0_0] : memref<20x50xf32, #tpu.memory_space<vmem>>, vector<20x50xf32>
    %c0_1 = arith.constant 0 : index
    %c0_2 = arith.constant 0 : index
    %1 = vector.load %arg1[%c0_1, %c0_2] : memref<128x50xf32, #tpu.memory_space<vmem>>, vector<128x50xf32>
    %cst = arith.constant dense<0.000000e+00> : vector<20x128xf32>
    %2 = tpu.matmul %0, %1, %cst {dimension_numbers = #tpu.dot_dimension_numbers<[1], [1], [0], [0], [0, 0, 1, 0], [], []>} : vector<20x50xf32>, vector<128x50xf32>, vector<20x128xf32> -> vector<20x128xf32>
    %c0_3 = arith.constant 0 : index
    %c0_4 = arith.constant 0 : index
    %3 = vector.load %arg3[%c0_3, %c0_4] : memref<20x1xf32, #tpu.memory_space<vmem>>, vector<20x1xf32>
    %4 = vector.broadcast %3 : vector<20x1xf32> to vector<20x128xf32>
    %5 = arith.addf %2, %4 : vector<20x128xf32>
    %cst_5 = arith.constant 0.000000e+00 : f32
    %6 = vector.broadcast %cst_5 : f32 to vector<20x128xf32>
    %7 = arith.maximumf %5, %6 : vector<20x128xf32>
    %c0_6 = arith.constant 0 : index
    %c0_7 = arith.constant 0 : index
    %8 = vector.load %arg4[%c0_6, %c0_7] : memref<2x20xf32, #tpu.memory_space<vmem>>, vector<2x20xf32>
    %cst_8 = arith.constant dense<0.000000e+00> : vector<2x128xf32>
    %9 = tpu.matmul %8, %7, %cst_8 {dimension_numbers = #tpu.dot_dimension_numbers<[1], [0], [0], [1], [0, 0, 1, 1], [], []>} : vector<2x20xf32>, vector<20x128xf32>, vector<2x128xf32> -> vector<2x128xf32>
    %c0_9 = arith.constant 0 : index
    %c0_10 = arith.constant 0 : index
    %10 = vector.load %arg5[%c0_9, %c0_10] : memref<2x1xf32, #tpu.memory_space<vmem>>, vector<2x1xf32>
    %11 = vector.broadcast %10 : vector<2x1xf32> to vector<2x128xf32>
    %12 = arith.addf %9, %11 : vector<2x128xf32>
    %c0_11 = arith.constant 0 : index
    %c0_12 = arith.constant 0 : index
    %13 = vector.load %arg6[%c0_11, %c0_12] : memref<2x128xf32, #tpu.memory_space<vmem>>, vector<2x128xf32>
    tpu.vector_store %arg6[%c0_11, %c0_12], %12 {strides = array<i32>} : memref<2x128xf32, #tpu.memory_space<vmem>>, vector<2x128xf32>,
    return
  }
  func.func @transform_0(%arg0: i32) -> (i32, i32) {
    %c0_i32 = arith.constant 0 : i32
    %c0_i32_0 = arith.constant 0 : i32
    return %arg0, %c0_i32 : i32, i32
  }
  func.func @transform_1(%arg0: i32) -> (i32, i32) {
    %c0_i32 = arith.constant 0 : i32
    %c0_i32_0 = arith.constant 0 : i32
    %c0_i32_1 = arith.constant 0 : i32
    return %c0_i32, %c0_i32_0 : i32, i32
  }
  func.func @transform_2(%arg0: i32) -> (i32, i32) {
    %c0_i32 = arith.constant 0 : i32
    %c0_i32_0 = arith.constant 0 : i32
    %c0_i32_1 = arith.constant 0 : i32
    return %c0_i32, %c0_i32_0 : i32, i32
  }
  func.func @transform_3(%arg0: i32) -> (i32, i32) {
    %c0_i32 = arith.constant 0 : i32
    %c0_i32_0 = arith.constant 0 : i32
    %c0_i32_1 = arith.constant 0 : i32
    return %c0_i32, %c0_i32_0 : i32, i32
  }
  func.func @transform_4(%arg0: i32) -> (i32, i32) {
    %c0_i32 = arith.constant 0 : i32
    %c0_i32_0 = arith.constant 0 : i32
    %c0_i32_1 = arith.constant 0 : i32
    return %c0_i32, %c0_i32_0 : i32, i32
  }
  func.func @transform_5(%arg0: i32) -> (i32, i32) {
    %c0_i32 = arith.constant 0 : i32
    %c0_i32_0 = arith.constant 0 : i32
    return %c0_i32, %arg0 : i32, i32
  }
}

</mosaic_0001>

<llo_original>
// kernel: tpu_custom_call.1
$region0: #{tpu_custom_call.1}
  #allocation0 [shape = 'u32[]', space=smem, size = 0x4, offset = 0x4, fixed_abs, tag = 'smem constant byte address 0x4 - core index']
  #allocation1 [shape = 'u32[144,128]{1,0:T(1,128)}', space=vmem, size = 0x12000, scoped, tag = 'internal scratch']
  %s0 = inlined_call_operand.vmem [shape: f32[128,50], index: 0, kind: input, shape index: {}]
  %s1 = inlined_call_operand.vmem [shape: f32[20,50], index: 1, kind: input, shape index: {}]
  %s2 = inlined_call_operand.vmem [shape: f32[20,1], index: 2, kind: input, shape index: {}]
  %s3 = inlined_call_operand.vmem [shape: f32[2,20], index: 3, kind: input, shape index: {}]
  %s4 = inlined_call_operand.vmem [shape: f32[2,1], index: 4, kind: input, shape index: {}]
  %s5 = inlined_call_operand.hbm [shape: f32[2,128], index: 5, kind: output, shape index: {}]
  %s6 = sld [smem:[#allocation0]]
  $region30: #{tpu_custom_call.1} parent=0
    _
  %s8 = ssub.s32 1, %s6
  %s9 = scalar_select 0, %s8, %s6
  $region1: #{tpu_custom_call.1} parent=0
    #allocation2 [shape = 'u8[1024]{0}', space=vmem, size = 0x400, scoped, tag = 'output window, operand 0, single buffered']
    #allocation3 [shape = 's32[1]{0}', space=sflag, size = 0x4, scoped, tag = 'scoped memory for tpu_custom_call.1']
    %10 = vsyncpa [#allocation3], 0
    // Predicated region
    $region2: #{tpu_custom_call.1} parent=1 // pred_check
      _
    $region3: #{tpu_custom_call.1} parent=1 // pred_check_branch
      %12 = sbr.rel (0) target = $region5
    $region4: #{tpu_custom_call.1} parent=1 // pred_region
      _
    $region5: #{tpu_custom_call.1} parent=1 // pred_fallthru
      _
    // Predicated region
    $region6: #{tpu_custom_call.1} parent=1 // pred_check
      _
    $region7: #{tpu_custom_call.1} parent=1 // pred_check_branch
      %14 = sbr.rel (0) target = $region9
    $region8: #{tpu_custom_call.1} parent=1 // pred_region
      _
    $region9: #{tpu_custom_call.1} parent=1 // pred_fallthru
      _
    // Predicated region
    $region10: #{tpu_custom_call.1} parent=1 // pred_check
      _
    $region11: #{tpu_custom_call.1} parent=1 // pred_check_branch
      %16 = sbr.rel (0) target = $region13
    $region12: #{tpu_custom_call.1} parent=1 // pred_region
      _
    $region13: #{tpu_custom_call.1} parent=1 // pred_fallthru
      _
    // Predicated region
    $region14: #{tpu_custom_call.1} parent=1 // pred_check
      _
    $region15: #{tpu_custom_call.1} parent=1 // pred_check_branch
      %18 = sbr.rel (0) target = $region17
    $region16: #{tpu_custom_call.1} parent=1 // pred_region
      _
    $region17: #{tpu_custom_call.1} parent=1 // pred_fallthru
      _
    // Predicated region
    $region18: #{tpu_custom_call.1} parent=1 // pred_check
      _
    $region19: #{tpu_custom_call.1} parent=1 // pred_check_branch
      %20 = sbr.rel (0) target = $region21
    $region20: #{tpu_custom_call.1} parent=1 // pred_region
      _
    $region21: #{tpu_custom_call.1} parent=1 // pred_fallthru
      _
    %v21 = vld [vmem:[%s1] sm:$0xff]
    %v22 = vld [vmem:[%s1 + $0x8] sm:$0xff]
    %v23 = vld [vmem:[%s1 + $0x10] sm:$0xf]
    %v24 = vld [vmem:[%s0] sm:$0xff]
    %v25 = vld [vmem:[%s0 + $0x8] sm:$0xff]
    %v26 = vld [vmem:[%s0 + $0x10] sm:$0xff]
    %v27 = vld [vmem:[%s0 + $0x18] sm:$0xff]
    %v28 = vld [vmem:[%s0 + $0x20] sm:$0xff]
    %v29 = vld [vmem:[%s0 + $0x28] sm:$0xff]
    %v30 = vld [vmem:[%s0 + $0x30] sm:$0xff]
    %v31 = vld [vmem:[%s0 + $0x38] sm:$0xff]
    %v32 = vld [vmem:[%s0 + $0x40] sm:$0xff]
    %v33 = vld [vmem:[%s0 + $0x48] sm:$0xff]
    %v34 = vld [vmem:[%s0 + $0x50] sm:$0xff]
    %v35 = vld [vmem:[%s0 + $0x58] sm:$0xff]
    %v36 = vld [vmem:[%s0 + $0x60] sm:$0xff]
    %v37 = vld [vmem:[%s0 + $0x68] sm:$0xff]
    %v38 = vld [vmem:[%s0 + $0x70] sm:$0xff]
    %v39 = vld [vmem:[%s0 + $0x78] sm:$0xff]
    %v40 = vld [vmem:[%s2] sm:$0xff]
    %v41 = vld [vmem:[%s2 + $0x8] sm:$0xff]
    %v42 = vld [vmem:[%s2 + $0x10] sm:$0xf]
    %44 = vset.pattern.permute.xlu0 0
    %45 = vperm.xlu0 %44, %v40
    %v46 = vpop.permute.xlu0 %45
    %49 = vset.pattern.permute.xlu0 0
    %50 = vperm.xlu0 %49, %v41
    %v51 = vpop.permute.xlu0 %50
    %54 = vset.pattern.permute.xlu0 0
    %55 = vperm.xlu0 %54, %v42
    %v56 = vpop.permute.xlu0 %55
    %vm58 = vcmask 408576
    %v60 = vsel %vm58, %v21, 0
    %v63 = vsel %vm58, %v22, 0
    %v66 = vsel %vm58, %v23, 0
    %v69 = vsel %vm58, %v24, 0
    %v72 = vsel %vm58, %v25, 0
    %v75 = vsel %vm58, %v26, 0
    %v78 = vsel %vm58, %v27, 0
    %v81 = vsel %vm58, %v28, 0
    %v84 = vsel %vm58, %v29, 0
    %v87 = vsel %vm58, %v30, 0
    %v90 = vsel %vm58, %v31, 0
    %v93 = vsel %vm58, %v32, 0
    %v96 = vsel %vm58, %v33, 0
    %v99 = vsel %vm58, %v34, 0
    %v102 = vsel %vm58, %v35, 0
    %v105 = vsel %vm58, %v36, 0
    %v108 = vsel %vm58, %v37, 0
    %v111 = vsel %vm58, %v38, 0
    %v114 = vsel %vm58, %v39, 0
    %116 = vmatprep.subr.mxu0 0.0
    %117 = vmatpush1.xpose.msra.mxu0 %v114
    %118 = vmatprep.subr.mxu0 0.0
    %119 = vmatpush1.xpose.msra.mxu0 %v111
    %120 = vmatprep.subr.mxu0 0.0
    %121 = vmatpush1.xpose.msra.mxu0 %v108
    %122 = vmatprep.subr.mxu0 0.0
    %123 = vmatpush1.xpose.msra.mxu0 %v105
    %124 = vmatprep.subr.mxu0 0.0
    %125 = vmatpush1.xpose.msra.mxu0 %v102
    %126 = vmatprep.subr.mxu0 0.0
    %127 = vmatpush1.xpose.msra.mxu0 %v99
    %128 = vmatprep.subr.mxu0 0.0
    %129 = vmatpush1.xpose.msra.mxu0 %v96
    %130 = vmatprep.subr.mxu0 0.0
    %131 = vmatpush1.xpose.msra.mxu0 %v93
    %132 = vmatprep.subr.mxu0 0.0
    %133 = vmatpush1.xpose.msra.mxu0 %v90
    %134 = vmatprep.subr.mxu0 0.0
    %135 = vmatpush1.xpose.msra.mxu0 %v87
    %136 = vmatprep.subr.mxu0 0.0
    %137 = vmatpush1.xpose.msra.mxu0 %v84
    %138 = vmatprep.subr.mxu0 0.0
    %139 = vmatpush1.xpose.msra.mxu0 %v81
    %140 = vmatprep.subr.mxu0 0.0
    %141 = vmatpush1.xpose.msra.mxu0 %v78
    %142 = vmatprep.subr.mxu0 0.0
    %143 = vmatpush1.xpose.msra.mxu0 %v75
    %144 = vmatprep.subr.mxu0 0.0
    %145 = vmatpush1.xpose.msra.mxu0 %v72
    %146 = vmatprep.subr.mxu0 0.0
    %147 = vmatpush1.xpose.msra.mxu0 %v69
    %148 = vmatprep.subr.mxu0 0.0
    %149 = vmatpush2.xpose.msra.mxu0 0.0
    %150 = vmatprep.subr.mxu0 0.0
    %151 = vmatpush2.xpose.msra.mxu0 0.0
    %152 = vmatprep.subr.mxu0 0.0
    %153 = vmatpush2.xpose.msra.mxu0 0.0
    %154 = vmatprep.subr.mxu0 0.0
    %155 = vmatpush2.xpose.msra.mxu0 0.0
    %156 = vmatprep.subr.mxu0 0.0
    %157 = vmatpush2.xpose.msra.mxu0 0.0
    %158 = vmatprep.subr.mxu0 0.0
    %159 = vmatpush2.xpose.msra.mxu0 0.0
    %160 = vmatprep.subr.mxu0 0.0
    %161 = vmatpush2.xpose.msra.mxu0 0.0
    %162 = vmatprep.subr.mxu0 0.0
    %163 = vmatpush2.xpose.msra.mxu0 0.0
    %164 = vmatprep.subr.mxu0 0.0
    %165 = vmatpush2.xpose.msra.mxu0 0.0
    %166 = vmatprep.subr.mxu0 0.0
    %167 = vmatpush2.xpose.msra.mxu0 0.0
    %168 = vmatprep.subr.mxu0 0.0
    %169 = vmatpush2.xpose.msra.mxu0 0.0
    %170 = vmatprep.subr.mxu0 0.0
    %171 = vmatpush2.xpose.msra.mxu0 0.0
    %172 = vmatprep.subr.mxu0 0.0
    %173 = vmatpush2.xpose.msra.mxu0 0.0
    %174 = vmatprep.subr.mxu0 0.0
    %175 = vmatpush2.xpose.msra.mxu0 0.0
    %176 = vmatprep.subr.mxu0 0.0
    %177 = vmatpush2.xpose.msra.mxu0 0.0
    %178 = vmatprep.subr.mxu0 0.0
    %179 = vmatpush2.xpose.msra.mxu0 0.0
    %180 = vmatprep.mubr.f32.mxu0 0.0
    %181 = vmatmul.mubr.f32.gmra.mxu0 %v60
    %v182 = vpop.f32.mrf.mxu0
    %v183 = vadd.f32 %v46, %v182
    %v184 = vpop.f32.mrf.mxu0
    %185 = vmatprep.mubr.f32.mxu0 0.0
    %186 = vmatmul.mubr.f32.gmra.mxu0 %v63
    %v187 = vpop.f32.mrf.mxu0
    %v188 = vadd.f32 %v51, %v187
    %v189 = vpop.f32.mrf.mxu0
    %190 = vmatprep.mubr.f32.mxu0 0.0
    %191 = vmatmul.mubr.f32.gmra.mxu0 %v66
    %v192 = vpop.f32.mrf.mxu0
    %v193 = vadd.f32 %v56, %v192
    %v194 = vpop.f32.mrf.mxu0
    %195 = vdwg.mxu0
    %v196 = vmax.f32 %v183, 0.0
    %v197 = vmax.f32 %v188, 0.0
    %v198 = vmax.f32 %v193, 0.0
    %v199 = vld [vmem:[%s3] sm:$0x3]
    %v200 = vld [vmem:[%s4] sm:$0x3]
    %202 = vset.pattern.permute.xlu0 0
    %203 = vperm.xlu0 %202, %v200
    %v204 = vpop.permute.xlu0 %203
    %vm206 = vcmask 162816
    %v208 = vsel %vm206, %v199, 0
    %vm210 = vcmask 1043456
    %v212 = vsel %vm210, %v198, 0
    %214 = vmatprep.subr.mxu0 0.0
    %215 = vmatpush1.msra.mxu0 0.0
    %216 = vmatprep.subr.mxu0 0.0
    %217 = vmatpush1.msra.mxu0 0.0
    %218 = vmatprep.subr.mxu0 0.0
    %219 = vmatpush1.msra.mxu0 0.0
    %220 = vmatprep.subr.mxu0 0.0
    %221 = vmatpush1.msra.mxu0 0.0
    %222 = vmatprep.subr.mxu0 0.0
    %223 = vmatpush1.msra.mxu0 0.0
    %224 = vmatprep.subr.mxu0 0.0
    %225 = vmatpush1.msra.mxu0 0.0
    %226 = vmatprep.subr.mxu0 0.0
    %227 = vmatpush1.msra.mxu0 0.0
    %228 = vmatprep.subr.mxu0 0.0
    %229 = vmatpush1.msra.mxu0 0.0
    %230 = vmatprep.subr.mxu0 0.0
    %231 = vmatpush1.msra.mxu0 0.0
    %232 = vmatprep.subr.mxu0 0.0
    %233 = vmatpush1.msra.mxu0 0.0
    %234 = vmatprep.subr.mxu0 0.0
    %235 = vmatpush1.msra.mxu0 0.0
    %236 = vmatprep.subr.mxu0 0.0
    %237 = vmatpush1.msra.mxu0 0.0
    %238 = vmatprep.subr.mxu0 0.0
    %239 = vmatpush1.msra.mxu0 0.0
    %240 = vmatprep.subr.mxu0 0.0
    %241 = vmatpush1.msra.mxu0 %v212
    %242 = vmatprep.subr.mxu0 0.0
    %243 = vmatpush1.msra.mxu0 %v197
    %244 = vmatprep.subr.mxu0 0.0
    %245 = vmatpush1.msra.mxu0 %v196
    %246 = vmatprep.subr.mxu0 0.0
    %247 = vmatpush2.msra.mxu0 0.0
    %248 = vmatprep.subr.mxu0 0.0
    %249 = vmatpush2.msra.mxu0 0.0
    %250 = vmatprep.subr.mxu0 0.0
    %251 = vmatpush2.msra.mxu0 0.0
    %252 = vmatprep.subr.mxu0 0.0
    %253 = vmatpush2.msra.mxu0 0.0
    %254 = vmatprep.subr.mxu0 0.0
    %255 = vmatpush2.msra.mxu0 0.0
    %256 = vmatprep.subr.mxu0 0.0
    %257 = vmatpush2.msra.mxu0 0.0
    %258 = vmatprep.subr.mxu0 0.0
    %259 = vmatpush2.msra.mxu0 0.0
    %260 = vmatprep.subr.mxu0 0.0
    %261 = vmatpush2.msra.mxu0 0.0
    %262 = vmatprep.subr.mxu0 0.0
    %263 = vmatpush2.msra.mxu0 0.0
    %264 = vmatprep.subr.mxu0 0.0
    %265 = vmatpush2.msra.mxu0 0.0
    %266 = vmatprep.subr.mxu0 0.0
    %267 = vmatpush2.msra.mxu0 0.0
    %268 = vmatprep.subr.mxu0 0.0
    %269 = vmatpush2.msra.mxu0 0.0
    %270 = vmatprep.subr.mxu0 0.0
    %271 = vmatpush2.msra.mxu0 0.0
    %272 = vmatprep.subr.mxu0 0.0
    %273 = vmatpush2.msra.mxu0 0.0
    %274 = vmatprep.subr.mxu0 0.0
    %275 = vmatpush2.msra.mxu0 0.0
    %276 = vmatprep.subr.mxu0 0.0
    %277 = vmatpush2.msra.mxu0 0.0
    %278 = vmatprep.mubr.f32.mxu0 0.0
    %279 = vmatmul.mubr.f32.gmra.mxu0 %v208
    %v280 = vpop.f32.mrf.mxu0
    %v281 = vadd.f32 %v204, %v280
    %v282 = vpop.f32.mrf.mxu0
    %283 = vdwg.mxu0
    %284 = vst [vmem:[#allocation2] sm:$0x3] %v281
    // Predicated region
    $region22: #{tpu_custom_call.1} parent=1 // pred_check
      _
    $region23: #{tpu_custom_call.1} parent=1 // pred_check_branch
      %286 = sbr.rel (0) target = $region25
    $region24: #{tpu_custom_call.1} parent=1 // pred_region
      %s288 = ssub.s32 32, 32
      %289 = vsyncadd [#allocation3], %s288
      %s291 = sshll.u32 [#allocation2], 4
      %s292 = int_to_ptr.vmem [resolvable:$true] %s291
      %294 = dma.vmem_to_hbm [thread:$0]  %s292, 32, %s5, [#allocation3]
    $region25: #{tpu_custom_call.1} parent=1 // pred_fallthru
      _
    // Predicated region
    $region26: #{tpu_custom_call.1} parent=1 // pred_check
      _
    $region27: #{tpu_custom_call.1} parent=1 // pred_check_branch
      %296 = sbr.rel (0) target = $region29
    $region28: #{tpu_custom_call.1} parent=1 // pred_region
      %297 = dma.done [#allocation3], 32
    $region29: #{tpu_custom_call.1} parent=1 // pred_fallthru
      _
    %298 = vsyncpa [#allocation3], 1

</llo_original>
